<compile_context>
chip_gen: v6e
topology: v6e:2x2x1
jax: 0.10.0
libtpu: 0.0.40
codegen_flags: <defaults>
</compile_context>

<pallas_src>
import functools

import jax
import jax.numpy as jnp
from jax.experimental import pallas as pl
from jax.experimental.pallas import tpu as pltpu


def _vmem_capacity_bytes():
    """Physical VMEM of the current TPU generation (fallback: v7x's 64 MiB)."""
    try:
        info = pltpu.get_tpu_info()
        cap = int(getattr(info, "vmem_capacity_bytes", 0))
        if cap > 0:
            return cap
    except Exception:
        pass
    return 64 * 1024 * 1024


def _band_matrix(conv_w, channels):
    """(C, C) f32 band B with B[c, j] = w[j - c + pad] (zero-padded Conv1d over
    channels), so conv(y)[c] = sum_j B[c, j] * y[j]. Built once in the wrapper."""
    taps = conv_w.reshape(-1).astype(jnp.float32)
    k = taps.shape[0]
    pad = (k - 1) // 2
    c = jnp.arange(channels)[:, None]
    j = jnp.arange(channels)[None, :]
    d = j - c + pad
    valid = (d >= 0) & (d < k)
    return jnp.where(valid, taps[jnp.clip(d, 0, k - 1)], 0.0)


def _channel_scale(band, total, inv_hw):
    """mean -> channel conv (tiny MXU matvec) -> 1 + sigmoid. total: (1,C,1) f32."""
    mean = total[0] * inv_hw                                        # (C, 1)
    conv = jnp.dot(band, mean, preferred_element_type=jnp.float32)  # (C, 1)
    return (1.0 + jax.nn.sigmoid(conv))[None]                       # (1, C, 1)


# ----------------------------- two-pass kernels -----------------------------


def _eca_pool_kernel(band_ref, x_ref, scale_ref, acc_ref, *, hw, tile, ragged):
    """Pass 1: tiled spatial partial sums -> mean -> channel conv -> 1+sigmoid.

    band_ref:  VMEM (C, C) f32 banded conv matrix.
    x_ref:     VMEM (1, C, tile) spatial tile of one sample (model dtype).
    scale_ref: VMEM (1, C, 1) f32 output, written once per sample.
    acc_ref:   VMEM (1, C, 128) f32 scratch — per-lane partial sums, persists
               across the (innermost, 'arbitrary') spatial grid axis.
    """
    h = pl.program_id(1)
    n_h = pl.num_programs(1)
    c = x_ref.shape[1]

    @pl.when(h == 0)
    def _init():
        acc_ref[...] = jnp.zeros_like(acc_ref)

    n_chunks = tile // 128

    def _accumulate(masked):
        # Chunked f32 accumulation: plain VPU adds, no per-tile lane reduce,
        # no whole-tile f32 materialization.
        if masked:
            lane = jax.lax.broadcasted_iota(jnp.int32, (1, c, 128), 2)
            base = h * tile
        for j in range(n_chunks):
            chunk = x_ref[:, :, j * 128:(j + 1) * 128].astype(jnp.float32)
            if masked:
                chunk = jnp.where(base + (j * 128) + lane < hw, chunk, 0.0)
            acc_ref[...] += chunk

    if ragged:
        @pl.when(h == n_h - 1)
        def _tail():
            _accumulate(masked=True)     # zero the lanes past H*W

        @pl.when(h != n_h - 1)
        def _full():
            _accumulate(masked=False)
    else:
        _accumulate(masked=False)

    @pl.when(h == n_h - 1)
    def _finalize():
        total = jnp.sum(acc_ref[...], axis=-1, keepdims=True)       # (1, C, 1)
        scale_ref[...] = _channel_scale(band_ref[...], total, 1.0 / hw)


def _eca_apply_kernel(s_ref, x_ref, o_ref):
    """Pass 2: out = x * scale (scale already holds 1 + sigmoid(conv(mean)))."""
    x = x_ref[...]
    o_ref[...] = x * s_ref[...].astype(x.dtype)


# ------------------------------ fused kernel --------------------------------


def _eca_fused_kernel(band_ref, x_ref, o_ref, acc_ref, *, hw):
    """Single HBM pass per sample: sum -> conv -> sigmoid -> out = x * scale."""
    acc_ref[...] = jnp.zeros_like(acc_ref)
    n_full = hw // 128
    rem = hw - n_full * 128

    if n_full > 0:
        @pl.loop(0, n_full)
        def _(j):
            start = pl.multiple_of(j * 128, 128)
            acc_ref[...] += x_ref[:, :, pl.ds(start, 128)].astype(jnp.float32)

    total = jnp.sum(acc_ref[...], axis=-1, keepdims=True)           # (1, C, 1)
    if rem > 0:
        tail = x_ref[:, :, n_full * 128:hw].astype(jnp.float32)
        total = total + jnp.sum(tail, axis=-1, keepdims=True)

    scale = _channel_scale(band_ref[...], total, 1.0 / hw)          # (1, C, 1)
    x = x_ref[...]
    o_ref[...] = x * scale.astype(x.dtype)


# -------------------------------- wrapper ------------------------------------


def _pick_spatial_tile(hw, channels, itemsize, budget_bytes, max_tile):
    """Largest multiple of 128 <= max_tile whose pass-2 working set fits."""
    hw128 = ((hw + 127) // 128) * 128
    t = max(128, min(max_tile, hw128))
    while t > 128 and 4 * channels * t * itemsize > budget_bytes:
        t -= 128
    return t


def eca_forward(x_nchw, conv_w, *, max_hw_tile=2048, force_two_pass=False):
    """ECA forward. x_nchw: (N, C, H, W); conv_w: (1, 1, k) nn.Conv1d weight."""
    n, c, h_dim, w_dim = x_nchw.shape
    k = conv_w.shape[-1]
    assert k % 2 == 1, "ECA uses an odd kernel size"

    hw = h_dim * w_dim
    x = x_nchw.reshape(n, c, hw)             # free reshape, no HBM pass
    itemsize = x.dtype.itemsize

    band = _band_matrix(conv_w, c)            # (C, C) f32, tiny wrapper work

    vmem_cap = _vmem_capacity_bytes()
    band_bytes = 2 * c * c * 4                # double-buffered band block
    acc_bytes = c * 128 * 4                   # f32 scratch

    # ---- fused single-pass: x read once / written once ----------------------
    sample_bytes = c * hw * itemsize
    fused_need = 4 * sample_bytes + band_bytes + acc_bytes + (1 << 20)
    if not force_two_pass and fused_need <= int(0.75 * vmem_cap):
        vmem_limit = int(min(vmem_cap, max(fused_need + (4 << 20), 32 << 20)))
        out = pl.pallas_call(
            functools.partial(_eca_fused_kernel, hw=hw),
            out_shape=jax.ShapeDtypeStruct((n, c, hw), x.dtype),
            grid=(n,),
            in_specs=[pl.BlockSpec((c, c), lambda i: (0, 0)),
                      pl.BlockSpec((1, c, hw), lambda i: (i, 0, 0))],
            out_specs=pl.BlockSpec((1, c, hw), lambda i: (i, 0, 0)),
            scratch_shapes=[pltpu.VMEM((1, c, 128), jnp.float32)],
            compiler_params=pltpu.CompilerParams(
                dimension_semantics=("parallel",),
                vmem_limit_bytes=vmem_limit),
        )(band, x)
        return out.reshape(n, c, h_dim, w_dim)

    # ---- two tiled passes ----------------------------------------------------
    tile_budget = min(int(0.6 * vmem_cap), 40 << 20)
    t = _pick_spatial_tile(hw, c, itemsize, tile_budget, max_hw_tile)
    n_hw = pl.cdiv(hw, t)
    ragged = (hw % t) != 0

    p1_need = 2 * c * t * itemsize + band_bytes + acc_bytes + 2 * c * 4
    p2_need = 4 * c * t * itemsize + 2 * c * 4
    vmem_limit = int(min(vmem_cap,
                         max(max(p1_need, p2_need) + (4 << 20), 32 << 20)))

    # Pass 1: per-(n, c) attention scale = 1 + sigmoid(conv(mean)).
    scale = pl.pallas_call(
        functools.partial(_eca_pool_kernel, hw=hw, tile=t, ragged=ragged),
        out_shape=jax.ShapeDtypeStruct((n, c, 1), jnp.float32),
        grid=(n, n_hw),
        in_specs=[pl.BlockSpec((c, c), lambda i, j: (0, 0)),
                  pl.BlockSpec((1, c, t), lambda i, j: (i, 0, j))],
        out_specs=pl.BlockSpec((1, c, 1), lambda i, j: (i, 0, 0)),
        scratch_shapes=[pltpu.VMEM((1, c, 128), jnp.float32)],
        compiler_params=pltpu.CompilerParams(
            dimension_semantics=("parallel", "arbitrary"),
            vmem_limit_bytes=vmem_limit),
    )(band, x)

    # Pass 2: out = x * scale (HBM-bandwidth bound, fully parallel).
    out = pl.pallas_call(
        _eca_apply_kernel,
        out_shape=jax.ShapeDtypeStruct((n, c, hw), x.dtype),
        grid=(n, n_hw),
        in_specs=[pl.BlockSpec((1, c, 1), lambda i, j: (i, 0, 0)),
                  pl.BlockSpec((1, c, t), lambda i, j: (i, 0, j))],
        out_specs=pl.BlockSpec((1, c, t), lambda i, j: (i, 0, j)),
        compiler_params=pltpu.CompilerParams(
            dimension_semantics=("parallel", "parallel"),
            vmem_limit_bytes=vmem_limit),
    )(scale, x)

    return out.reshape(n, c, h_dim, w_dim)


def eca_reference(x_nchw, conv_w):
    """Pure-JAX reference mirroring the PyTorch module exactly."""
    _, c, _, _ = x_nchw.shape
    k = conv_w.shape[-1]
    pad = (k - 1) // 2
    y = jnp.mean(x_nchw.astype(jnp.float32), axis=(2, 3))            # (N, C)
    ypad = jnp.pad(y, ((0, 0), (pad, pad)))
    taps = conv_w.reshape(-1).astype(jnp.float32)
    conv = sum(taps[i] * ypad[:, i:i + c] for i in range(k))          # (N, C)
    s = jax.nn.sigmoid(conv)[:, :, None, None]                        # (N,C,1,1)
    return (x_nchw + x_nchw * s).astype(x_nchw.dtype)


if __name__ == "__main__":
    key = jax.random.PRNGKey(0)
    kx, kw, kx2 = jax.random.split(key, 3)

    k_size = 3
    # Deterministic conv weight (stand-in for PyTorch's default init).
    conv_w = jax.random.normal(kw, (1, 1, k_size), dtype=jnp.float32) * 0.5

    # 1) Fused single-pass path (one sample fits VMEM).
    x = jax.random.normal(kx, (2, 4, 16, 16), dtype=jnp.float32)
    ref = eca_reference(x, conv_w)
    out = jax.block_until_ready(eca_forward(x, conv_w))
    assert out.shape == x.shape and out.dtype == x.dtype
    assert jnp.allclose(out, ref, atol=1e-5, rtol=1e-5), "fused mismatch"

    # 2) Two-pass path with multiple spatial tiles (grid=(N, 2), no tail).
    out2 = jax.block_until_ready(
        eca_forward(x, conv_w, max_hw_tile=128, force_two_pass=True))
    assert jnp.allclose(out2, ref, atol=1e-5, rtol=1e-5), "two-pass mismatch"

    # 3) Two-pass path with a ragged (non-multiple-of-128) spatial tail tile.
    x3 = jax.random.normal(kx2, (2, 8, 13, 13), dtype=jnp.float32)
    ref3 = eca_reference(x3, conv_w)
    out3 = jax.block_until_ready(
        eca_forward(x3, conv_w, max_hw_tile=128, force_two_pass=True))
    assert jnp.allclose(out3, ref3, atol=1e-5, rtol=1e-5), "ragged two-pass mismatch"

    # 4) Fused path with a ragged spatial extent (partial-chunk epilogue).
    out4 = jax.block_until_ready(eca_forward(x3, conv_w))
    assert jnp.allclose(out4, ref3, atol=1e-5, rtol=1e-5), "ragged fused mismatch"

    print("KERNEL_OK")
</pallas_src>

<mosaic_0001>
module attributes {stable_mosaic.version = 11 : i64} {
  func.func @_eca_fused_kernel(%arg0: i32, %arg1: memref<4x4xf32, #tpu.memory_space<vmem>>, %arg2: memref<1x4x256xf32, #tpu.memory_space<vmem>>, %arg3: memref<1x4x256xf32, #tpu.memory_space<vmem>>, %arg4: memref<1x4x128xf32, #tpu.memory_space<vmem>>) attributes {dimension_semantics = [#tpu.dimension_semantics<parallel>], iteration_bounds = array<i64: 2>, scalar_prefetch = 0 : i64, scratch_operands = 1 : i64, tpu.core_type = #tpu.core_type<tc>, window_params = [{pipeline_mode = #tpu.pipeline_mode<synchronous>, transform_indices = @transform_0, window_bounds = array<i64: 4, 4>}, {transform_indices = @transform_1, window_bounds = array<i64: 1, 4, 256>}, {transform_indices = @transform_2, window_bounds = array<i64: 1, 4, 256>}]} {
    %cst = arith.constant 0.000000e+00 : f32
    %0 = vector.broadcast %cst : f32 to vector<1x4x128xf32>
    %c0 = arith.constant 0 : index
    %c0_0 = arith.constant 0 : index
    %c0_1 = arith.constant 0 : index
    %1 = vector.load %arg4[%c0, %c0_0, %c0_1] : memref<1x4x128xf32, #tpu.memory_space<vmem>>, vector<1x4x128xf32>
    tpu.vector_store %arg4[%c0, %c0_0, %c0_1], %0 {strides = array<i32>} : memref<1x4x128xf32, #tpu.memory_space<vmem>>, vector<1x4x128xf32>,
    %c0_i32 = arith.constant 0 : i32
    %c2_i32 = arith.constant 2 : i32
    %2 = arith.addi %c0_i32, %c2_i32 : i32
    %c1_i32 = arith.constant 1 : i32
    scf.for %arg5 = %c0_i32 to %2 step %c1_i32  : i32 {
      %c1_i32_19 = arith.constant 1 : i32
      %23 = arith.muli %arg5, %c1_i32_19 : i32
      %c0_i32_20 = arith.constant 0 : i32
      %24 = arith.addi %c0_i32_20, %23 : i32
      %c128_i32 = arith.constant 128 : i32
      %25 = arith.muli %24, %c128_i32 : i32
      %26 = tpu.assume_multiple %25, 128 : i32
      %c0_21 = arith.constant 0 : index
      %c0_22 = arith.constant 0 : index
      %c0_23 = arith.constant 0 : index
      %27 = vector.load %arg4[%c0_21, %c0_22, %c0_23] : memref<1x4x128xf32, #tpu.memory_space<vmem>>, vector<1x4x128xf32>
      %c0_24 = arith.constant 0 : index
      %c0_25 = arith.constant 0 : index
      %28 = arith.index_cast %26 : i32 to index
      %29 = vector.load %arg2[%c0_24, %c0_25, %28] : memref<1x4x256xf32, #tpu.memory_space<vmem>>, vector<1x4x128xf32>
      %30 = arith.addf %27, %29 : vector<1x4x128xf32>
      %c0_26 = arith.constant 0 : index
      %c0_27 = arith.constant 0 : index
      %c0_28 = arith.constant 0 : index
      %31 = vector.load %arg4[%c0_26, %c0_27, %c0_28] : memref<1x4x128xf32, #tpu.memory_space<vmem>>, vector<1x4x128xf32>
      tpu.vector_store %arg4[%c0_26, %c0_27, %c0_28], %30 {strides = array<i32>} : memref<1x4x128xf32, #tpu.memory_space<vmem>>, vector<1x4x128xf32>,
    }
    %c2_i32_2 = arith.constant 2 : i32
    %c0_3 = arith.constant 0 : index
    %c0_4 = arith.constant 0 : index
    %c0_5 = arith.constant 0 : index
    %3 = vector.load %arg4[%c0_3, %c0_4, %c0_5] : memref<1x4x128xf32, #tpu.memory_space<vmem>>, vector<1x4x128xf32>
    %cst_6 = arith.constant dense<0.000000e+00> : vector<1x4xf32>
    %4 = vector.multi_reduction <add>, %3, %cst_6 [2] : vector<1x4x128xf32> to vector<1x4xf32>
    %5 = vector.shape_cast %4 : vector<1x4xf32> to vector<1x4x1xf32>
    %c0_7 = arith.constant 0 : index
    %c0_8 = arith.constant 0 : index
    %6 = vector.load %arg1[%c0_7, %c0_8] : memref<4x4xf32, #tpu.memory_space<vmem>>, vector<4x4xf32>
    %7 = vector.shape_cast %5 : vector<1x4x1xf32> to vector<4x1xf32>
    %cst_9 = arith.constant 3.906250e-03 : f32
    %8 = vector.broadcast %cst_9 : f32 to vector<4x1xf32>
    %9 = arith.mulf %7, %8 : vector<4x1xf32>
    %cst_10 = arith.constant dense<0.000000e+00> : vector<4x1xf32>
    %10 = tpu.matmul %6, %9, %cst_10 {dimension_numbers = #tpu.dot_dimension_numbers<[1], [0], [0], [1], [0, 0, 1, 1], [], []>} : vector<4x4xf32>, vector<4x1xf32>, vector<4x1xf32> -> vector<4x1xf32>
    %11 = arith.negf %10 : vector<4x1xf32>
    %12 = math.exp %11 : vector<4x1xf32>
    %cst_11 = arith.constant 1.000000e+00 : f32
    %13 = vector.broadcast %cst_11 : f32 to vector<4x1xf32>
    %14 = arith.addf %13, %12 : vector<4x1xf32>
    %15 = arith.divf %13, %14 : vector<4x1xf32>
    %cst_12 = arith.constant 1.000000e+00 : f32
    %16 = vector.broadcast %cst_12 : f32 to vector<4x1xf32>
    %17 = arith.addf %16, %15 : vector<4x1xf32>
    %18 = vector.shape_cast %17 : vector<4x1xf32> to vector<1x4x1xf32>
    %c0_13 = arith.constant 0 : index
    %c0_14 = arith.constant 0 : index
    %c0_15 = arith.constant 0 : index
    %19 = vector.load %arg2[%c0_13, %c0_14, %c0_15] : memref<1x4x256xf32, #tpu.memory_space<vmem>>, vector<1x4x256xf32>
    %20 = vector.broadcast %18 : vector<1x4x1xf32> to vector<1x4x256xf32>
    %21 = arith.mulf %19, %20 : vector<1x4x256xf32>
    %c0_16 = arith.constant 0 : index
    %c0_17 = arith.constant 0 : index
    %c0_18 = arith.constant 0 : index
    %22 = vector.load %arg3[%c0_16, %c0_17, %c0_18] : memref<1x4x256xf32, #tpu.memory_space<vmem>>, vector<1x4x256xf32>
    tpu.vector_store %arg3[%c0_16, %c0_17, %c0_18], %21 {strides = array<i32>} : memref<1x4x256xf32, #tpu.memory_space<vmem>>, vector<1x4x256xf32>,
    return
  }
  func.func @transform_0(%arg0: i32) -> (i32, i32) {
    %c0_i32 = arith.constant 0 : i32
    %c0_i32_0 = arith.constant 0 : i32
    %c0_i32_1 = arith.constant 0 : i32
    return %c0_i32, %c0_i32_0 : i32, i32
  }
  func.func @transform_1(%arg0: i32) -> (i32, i32, i32) {
    %c0_i32 = arith.constant 0 : i32
    %c0_i32_0 = arith.constant 0 : i32
    %c0_i32_1 = arith.constant 0 : i32
    return %arg0, %c0_i32, %c0_i32_0 : i32, i32, i32
  }
  func.func @transform_2(%arg0: i32) -> (i32, i32, i32) {
    %c0_i32 = arith.constant 0 : i32
    %c0_i32_0 = arith.constant 0 : i32
    %c0_i32_1 = arith.constant 0 : i32
    return %arg0, %c0_i32, %c0_i32_0 : i32, i32, i32
  }
}

</mosaic_0001>

<llo_original>
// kernel: tpu_custom_call.1
$region0: #{tpu_custom_call.1}
  #allocation0 [shape = 'u32[]', space=smem, size = 0x4, offset = 0x4, fixed_abs, tag = 'smem constant byte address 0x4 - core index']
  #allocation1 [shape = 'u32[144,128]{1,0:T(1,128)}', space=vmem, size = 0x12000, scoped, tag = 'internal scratch']
  #allocation2 [shape = 'f32[1,4,128]{2,1,0:T(4,128)}', space=vmem, size = 0x800, scoped, tag = 'scratch operand']
  %s0 = inlined_call_operand.hbm [shape: f32[4,4], index: 0, kind: input, shape index: {}]
  %s1 = inlined_call_operand.hbm [shape: f32[2,4,256], index: 1, kind: input, shape index: {}]
  %s2 = inlined_call_operand.hbm [shape: f32[2,4,256], index: 2, kind: output, shape index: {}]
  %s3 = sld [smem:[#allocation0]]
  $region56: #{tpu_custom_call.1} parent=0
    _
  %s5 = ssub.s32 1, %s3
  %s6 = scalar_select 0, %s5, %s3
  $region1: #{tpu_custom_call.1} parent=0
    #allocation3 [shape = 'u8[2048]{0}', space=vmem, size = 0x800, scoped, tag = 'input window, operand 0, single buffered']
    #allocation4 [shape = 's32[2]{0}', space=sflag, size = 0x8, scoped, tag = 'scoped memory for tpu_custom_call.1']
    #allocation5 [shape = 's32[2]{0}', space=sflag, size = 0x8, scoped, tag = 'scoped memory for tpu_custom_call.1']
    #allocation6 [shape = 'u8[8192]{0}', space=vmem, size = 0x2000, scoped, tag = 'input window, operand 1']
    #allocation7 [shape = 's32[2]{0}', space=sflag, size = 0x8, scoped, tag = 'scoped memory for tpu_custom_call.1']
    #allocation8 [shape = 'u8[8192]{0}', space=vmem, size = 0x2000, scoped, tag = 'output window, operand 0']
    %7 = vsyncpa [#allocation4], 0
    %8 = vsyncpa [#allocation7], 0
    %s9 = scalar_lea.sflag [#allocation7], 1
    %10 = vsyncpa %s9, 0
    %11 = vsyncpa [#allocation5], 0
    %s12 = scalar_lea.sflag [#allocation5], 1
    %13 = vsyncpa %s12, 0
    loop: start=0, step=1, limit=4
    $region2: #{tpu_custom_call.1} parent=1 // loop_pre_header
      _
    $region3: #{tpu_custom_call.1} parent=1 // loop_header
      %s15 = sphi 0, %s19
      %p16 = scmp.ge.s32.totalorder %s15, 4
      %s23 = sphi 0, %s23
      %s25 = sphi 0, %s23
      %s26 = sphi 0, %s25
      %s40 = sphi 0, %s26
      %s46 = sphi 0, %s48
      %s49 = sphi 0, %s46
      %s50 = sphi 0, %s49
      %s66 = sphi 0, %s50
      %s72 = sphi 0, %s74
      %s75 = sphi 0, %s72
      %s76 = sphi 0, %s75
      %s92 = sphi 0, %s76
    $region4: #{tpu_custom_call.1} parent=1 // loop_header_branch
      %18 = sbr.rel (%p16) target = $region8
    $region5: #{tpu_custom_call.1} parent=1 // loop_body
      %s20 = ssub.s32 %s15, 1
      %s21 = ssub.s32 %s15, 2
      %s22 = sadd.s32 %s15, 1
      %s24 = sadd.s32 %s23, 1
      %p27 = scmp.eq.s32.totalorder %s15, 1
      %p28 = scmp.ne.s32.totalorder %s23, %s25
      %p29 = scmp.eq.s32.totalorder %s15, 0
      %p30 = por %p28, %p29
      %p31 = scmp.ne.s32.totalorder %s23, %s25
      %p32 = scmp.eq.s32.totalorder %s20, 1
      %p33 = por %p31, %p32
      %p34 = scmp.ne.s32.totalorder %s25, %s26
      %p35 = scmp.eq.s32.totalorder %s20, 0
      %p36 = por %p34, %p35
      %p37 = scmp.ne.s32.totalorder %s25, %s26
      %p38 = scmp.eq.s32.totalorder %s21, 1
      %p39 = por %p37, %p38
      %p41 = scmp.ne.s32.totalorder %s26, %s40
      %p42 = scmp.eq.s32.totalorder %s21, 0
      %p43 = por %p41, %p42
      %s44 = ssub.s32 %s15, %s22
      %p45 = scmp.eq.s32.totalorder %s44, 0
      %s47 = sadd.s32 %s46, 1
      %s48 = scalar_select %p45, %s46, %s47
      %p51 = pneg %p45
      %p52 = scmp.eq.s32.totalorder %s15, 1
      %p53 = por %p51, %p52
      %p54 = scmp.ne.s32.totalorder %s46, %s49
      %p55 = scmp.eq.s32.totalorder %s15, 0
      %p56 = por %p54, %p55
      %p57 = scmp.ne.s32.totalorder %s46, %s49
      %p58 = scmp.eq.s32.totalorder %s20, 1
      %p59 = por %p57, %p58
      %p60 = scmp.ne.s32.totalorder %s49, %s50
      %p61 = scmp.eq.s32.totalorder %s20, 0
      %p62 = por %p60, %p61
      %p63 = scmp.ne.s32.totalorder %s49, %s50
      %p64 = scmp.eq.s32.totalorder %s21, 1
      %p65 = por %p63, %p64
      %p67 = scmp.ne.s32.totalorder %s50, %s66
      %p68 = scmp.eq.s32.totalorder %s21, 0
      %p69 = por %p67, %p68
      %s70 = ssub.s32 %s15, %s22
      %p71 = scmp.eq.s32.totalorder %s70, 0
      %s73 = sadd.s32 %s72, 1
      %s74 = scalar_select %p71, %s72, %s73
      %p77 = pneg %p71
      %p78 = scmp.eq.s32.totalorder %s15, 1
      %p79 = por %p77, %p78
      %p80 = scmp.ne.s32.totalorder %s72, %s75
      %p81 = scmp.eq.s32.totalorder %s15, 0
      %p82 = por %p80, %p81
      %p83 = scmp.ne.s32.totalorder %s72, %s75
      %p84 = scmp.eq.s32.totalorder %s20, 1
      %p85 = por %p83, %p84
      %p86 = scmp.ne.s32.totalorder %s75, %s76
      %p87 = scmp.eq.s32.totalorder %s20, 0
      %p88 = por %p86, %p87
      %p89 = scmp.ne.s32.totalorder %s75, %s76
      %p90 = scmp.eq.s32.totalorder %s21, 1
      %p91 = por %p89, %p90
      %p93 = scmp.ne.s32.totalorder %s76, %s92
      %p94 = scmp.eq.s32.totalorder %s21, 0
      %p95 = por %p93, %p94
      %p96 = scmp.le.s32.totalorder 1, %s15
      %p97 = scmp.lt.s32.totalorder %s15, 3
      %p98 = pnand %p96, %p97
      %p99 = pneg %p98
      // Predicated region
      $region9: #{tpu_custom_call.1} parent=5 // pred_check
        _
      $region10: #{tpu_custom_call.1} parent=5 // pred_check_branch
        %101 = sbr.rel (%p98) target = $region12
      $region11: #{tpu_custom_call.1} parent=5 // pred_region
        %s102 = ssub.s32 %s15, 1
        // Predicated region
        $region13: #{tpu_custom_call.1} parent=11 // pred_check
          %p103 = pneg %p36
        $region14: #{tpu_custom_call.1} parent=11 // pred_check_branch
          %105 = sbr.rel (%p103) target = $region16
        $region15: #{tpu_custom_call.1} parent=11 // pred_region
          %s107 = ssub.s32 64, 64
          %108 = vsyncadd [#allocation4], %s107
          %s110 = sshll.u32 [#allocation3], 4
          %s111 = int_to_ptr.vmem [resolvable:$true] %s110
          %113 = dma.hbm_to_vmem [thread:$0]  %s0, 64, %s111, [#allocation4]
        $region16: #{tpu_custom_call.1} parent=11 // pred_fallthru
          _
      $region12: #{tpu_custom_call.1} parent=5 // pred_fallthru
        _
      %p114 = scmp.lt.s32.totalorder %s15, 2
      // Predicated region
      $region17: #{tpu_custom_call.1} parent=5 // pred_check
        %p115 = pneg %p114
      $region18: #{tpu_custom_call.1} parent=5 // pred_check_branch
        %117 = sbr.rel (%p115) target = $region20
      $region19: #{tpu_custom_call.1} parent=5 // pred_region
        // Predicated region
        $region21: #{tpu_custom_call.1} parent=19 // pred_check
          %p118 = pneg %p56
        $region22: #{tpu_custom_call.1} parent=19 // pred_check_branch
          %120 = sbr.rel (%p118) target = $region24
        $region23: #{tpu_custom_call.1} parent=19 // pred_region
          %s121 = sand.u32 %s46, 1
          %s122 = scalar_lea.sflag [#allocation7], %s121
          %s123 = sand.u32 %s46, 1
          %s124 = smul.addr %s123, 8
          %s125 = scalar_lea.vmem [#allocation6], %s124
          %s127 = ssub.s32 128, 128
          %128 = vsyncadd %s122, %s127
          %s129 = smul.addr %s15, 2
          %s130 = smul.addr %s129, 64
          %s131 = scalar_lea.hbm %s1, %s130
          %s133 = sshll.u32 %s125, 4
          %s134 = int_to_ptr.vmem [resolvable:$true] %s133
          %136 = dma.hbm_to_vmem [thread:$0]  %s131, 128, %s134, %s122
        $region24: #{tpu_custom_call.1} parent=19 // pred_fallthru
          _
      $region20: #{tpu_custom_call.1} parent=5 // pred_fallthru
        _
      %p137 = scmp.le.s32.totalorder 1, %s15
      %p138 = scmp.lt.s32.totalorder %s15, 3
      %p139 = pnand %p137, %p138
      %p140 = pneg %p139
      // Predicated region
      $region25: #{tpu_custom_call.1} parent=5 // pred_check
        _
      $region26: #{tpu_custom_call.1} parent=5 // pred_check_branch
        %142 = sbr.rel (%p139) target = $region28
      $region27: #{tpu_custom_call.1} parent=5 // pred_region
        %s143 = ssub.s32 %s15, 1
        // Predicated region
        $region29: #{tpu_custom_call.1} parent=27 // pred_check
          %p144 = pneg %p36
        $region30: #{tpu_custom_call.1} parent=27 // pred_check_branch
          %146 = sbr.rel (%p144) target = $region32
        $region31: #{tpu_custom_call.1} parent=27 // pred_region
          %147 = dma.done [#allocation4], 64
        $region32: #{tpu_custom_call.1} parent=27 // pred_fallthru
          _
        %s148 = sand.u32 %s49, 1
        %s149 = scalar_lea.sflag [#allocation7], %s148
        %s150 = sand.u32 %s49, 1
        %s151 = smul.addr %s150, 8
        %s152 = scalar_lea.vmem [#allocation6], %s151
        // Predicated region
        $region33: #{tpu_custom_call.1} parent=27 // pred_check
          %p153 = pneg %p62
        $region34: #{tpu_custom_call.1} parent=27 // pred_check_branch
          %155 = sbr.rel (%p153) target = $region36
        $region35: #{tpu_custom_call.1} parent=27 // pred_region
          %156 = dma.done %s149, 128
        $region36: #{tpu_custom_call.1} parent=27 // pred_fallthru
          _
        %p157 = pneg %p36
        %p158 = pneg %p33
        %s159 = sand.u32 %s49, 1
        %s160 = scalar_lea.sflag [#allocation7], %s159
        %s161 = sand.u32 %s49, 1
        %s162 = smul.addr %s161, 8
        %s163 = scalar_lea.vmem [#allocation6], %s162
        %p164 = pneg %p62
        %p165 = pneg %p59
        %p166 = pneg %p88
        %p167 = pneg %p85
        %s168 = sand.u32 %s75, 1
        %s169 = scalar_lea.sflag [#allocation5], %s168
        %s170 = sand.u32 %s75, 1
        %s171 = smul.addr %s170, 8
        %s172 = scalar_lea.vmem [#allocation8], %s171
        %173 = vst [vmem:[#allocation2] sm:$0xf] 0.0
        loop: start=0, step=1, limit=2
        $region37: #{tpu_custom_call.1} parent=27 // loop_pre_header
          _
        $region38: #{tpu_custom_call.1} parent=27 // loop_header
          %s175 = sphi 0, %s179
          %p176 = scmp.ge.s32.totalorder %s175, 2
        $region39: #{tpu_custom_call.1} parent=27 // loop_header_branch
          %178 = sbr.rel (%p176) target = $region43
        $region40: #{tpu_custom_call.1} parent=27 // loop_body
          %s180 = smul.u32 %s175, 128
          %v181 = vld [vmem:[#allocation2] sm:$0xf]
          %s182 = sshra.s32 %s180, 7
          %s183 = sand.u32 %s180, 127
          %s184 = smul.addr %s182, 4
          %s185 = scalar_lea.vmem %s152, %s184 [#allocation6]
          %v186 = vld [vmem:[%s185] sm:$0xf]
          %v187 = vadd.f32 %v181, %v186
          %188 = vst [vmem:[#allocation2] sm:$0xf] %v187
        $region41: #{tpu_custom_call.1} parent=27 // loop_footer
          %s179 = sadd.s32 1, %s175
        $region42: #{tpu_custom_call.1} parent=27 // loop_footer_branch
          %174 = sbr.rel target = $region38
        $region43: #{tpu_custom_call.1} parent=27 // loop_exit
          _
        %v189 = vld [vmem:[#allocation2] sm:$0xf]
        %vm190 = vcmask 1043456
        %v191 = vsel %vm190, %v189, 0.0
        %192 = vadd.xlane.f32.xlu0 %v191
        %v193 = vpop.xlane.xlu0 %192
        %v194 = vld [vmem:[#allocation3] sm:$0xf]
        %v195 = vmul.f32 %v193, 0.00390625
        %vm196 = vcmask 31744
        %v198 = vsel %vm196, %v194, 0
        %v201 = vsel %vm190, %v195, 0
        %203 = vmatprep.subr.mxu0 0.0
        %204 = vmatpush1.msra.mxu0 0.0
        %205 = vmatprep.subr.mxu0 0.0
        %206 = vmatpush1.msra.mxu0 0.0
        %207 = vmatprep.subr.mxu0 0.0
        %208 = vmatpush1.msra.mxu0 0.0
        %209 = vmatprep.subr.mxu0 0.0
        %210 = vmatpush1.msra.mxu0 0.0
        %211 = vmatprep.subr.mxu0 0.0
        %212 = vmatpush1.msra.mxu0 0.0
        %213 = vmatprep.subr.mxu0 0.0
        %214 = vmatpush1.msra.mxu0 0.0
        %215 = vmatprep.subr.mxu0 0.0
        %216 = vmatpush1.msra.mxu0 0.0
        %217 = vmatprep.subr.mxu0 0.0
        %218 = vmatpush1.msra.mxu0 0.0
        %219 = vmatprep.subr.mxu0 0.0
        %220 = vmatpush1.msra.mxu0 0.0
        %221 = vmatprep.subr.mxu0 0.0
        %222 = vmatpush1.msra.mxu0 0.0
        %223 = vmatprep.subr.mxu0 0.0
        %224 = vmatpush1.msra.mxu0 0.0
        %225 = vmatprep.subr.mxu0 0.0
        %226 = vmatpush1.msra.mxu0 0.0
        %227 = vmatprep.subr.mxu0 0.0
        %228 = vmatpush1.msra.mxu0 0.0
        %229 = vmatprep.subr.mxu0 0.0
        %230 = vmatpush1.msra.mxu0 0.0
        %231 = vmatprep.subr.mxu0 0.0
        %232 = vmatpush1.msra.mxu0 0.0
        %233 = vmatprep.subr.mxu0 0.0
        %234 = vmatpush1.msra.mxu0 %v201
        %235 = vmatprep.subr.mxu0 0.0
        %236 = vmatpush2.msra.mxu0 0.0
        %237 = vmatprep.subr.mxu0 0.0
        %238 = vmatpush2.msra.mxu0 0.0
        %239 = vmatprep.subr.mxu0 0.0
        %240 = vmatpush2.msra.mxu0 0.0
        %241 = vmatprep.subr.mxu0 0.0
        %242 = vmatpush2.msra.mxu0 0.0
        %243 = vmatprep.subr.mxu0 0.0
        %244 = vmatpush2.msra.mxu0 0.0
        %245 = vmatprep.subr.mxu0 0.0
        %246 = vmatpush2.msra.mxu0 0.0
        %247 = vmatprep.subr.mxu0 0.0
        %248 = vmatpush2.msra.mxu0 0.0
        %249 = vmatprep.subr.mxu0 0.0
        %250 = vmatpush2.msra.mxu0 0.0
        %251 = vmatprep.subr.mxu0 0.0
        %252 = vmatpush2.msra.mxu0 0.0
        %253 = vmatprep.subr.mxu0 0.0
        %254 = vmatpush2.msra.mxu0 0.0
        %255 = vmatprep.subr.mxu0 0.0
        %256 = vmatpush2.msra.mxu0 0.0
        %257 = vmatprep.subr.mxu0 0.0
        %258 = vmatpush2.msra.mxu0 0.0
        %259 = vmatprep.subr.mxu0 0.0
        %260 = vmatpush2.msra.mxu0 0.0
        %261 = vmatprep.subr.mxu0 0.0
        %262 = vmatpush2.msra.mxu0 0.0
        %263 = vmatprep.subr.mxu0 0.0
        %264 = vmatpush2.msra.mxu0 0.0
        %265 = vmatprep.subr.mxu0 0.0
        %266 = vmatpush2.msra.mxu0 0.0
        %267 = vmatprep.mubr.f32.mxu0 0.0
        %268 = vmatmul.mubr.f32.gmra.mxu0 %v198
        %v269 = vpop.f32.mrf.mxu0
        %v270 = vadd.f32 0.0, %v269
        %v271 = vpop.f32.mrf.mxu0
        %272 = vdwg.mxu0
        %v273 = vxor.u32 %v270, 2147483648
        %v274 = vmul.f32 %v273, 1.442695
        %v275 = vpow.pop %v274
        %v276 = vadd.f32 %v275, 1.0
        %v277 = vrcp.pop %v276
        %v278 = vmul.f32 1.0, %v277
        %v279 = vadd.f32 %v278, 1.0
        %v280 = vld [vmem:[%s152] sm:$0xff]
        %282 = vset.pattern.permute.xlu0 0
        %283 = vperm.xlu0 %282, %v279
        %v284 = vpop.permute.xlu0 %283
        %v286 = vunpack.c.l.s4 839922192
        %v287 = vunpack.c.0.s8 %v286
        %v288 = vlaneseq
        %v289 = vshrl.u32 %v288, 7
        %v290 = vsub.s32 %v287, %v289
        %v291 = vrot.slane %v284, %v290
        %v293 = vmul.f32 %v280, %v291
        %294 = vst [vmem:[%s172] sm:$0xff] %v293
        %s295 = sand.u32 %s75, 1
        %s296 = scalar_lea.sflag [#allocation5], %s295
        %s297 = sand.u32 %s75, 1
        %s298 = smul.addr %s297, 8
        %s299 = scalar_lea.vmem [#allocation8], %s298
        // Predicated region
        $region44: #{tpu_custom_call.1} parent=27 // pred_check
          %p300 = pneg %p85
        $region45: #{tpu_custom_call.1} parent=27 // pred_check_branch
          %302 = sbr.rel (%p300) target = $region47
        $region46: #{tpu_custom_call.1} parent=27 // pred_region
          %s304 = ssub.s32 128, 128
          %305 = vsyncadd %s296, %s304
          %s306 = smul.addr %s20, 2
          %s307 = smul.addr %s306, 64
          %s308 = scalar_lea.hbm %s2, %s307
          %s310 = sshll.u32 %s299, 4
          %s311 = int_to_ptr.vmem [resolvable:$true] %s310
          %313 = dma.vmem_to_hbm [thread:$0]  %s311, 128, %s308, %s296
        $region47: #{tpu_custom_call.1} parent=27 // pred_fallthru
          _
      $region28: #{tpu_custom_call.1} parent=5 // pred_fallthru
        _
      %p314 = scmp.le.s32.totalorder 2, %s15
      // Predicated region
      $region48: #{tpu_custom_call.1} parent=5 // pred_check
        %p315 = pneg %p314
      $region49: #{tpu_custom_call.1} parent=5 // pred_check_branch
        %317 = sbr.rel (%p315) target = $region51
      $region50: #{tpu_custom_call.1} parent=5 // pred_region
        %s318 = ssub.s32 %s15, 2
        // Predicated region
        $region52: #{tpu_custom_call.1} parent=50 // pred_check
          %p319 = pneg %p91
        $region53: #{tpu_custom_call.1} parent=50 // pred_check_branch
          %321 = sbr.rel (%p319) target = $region55
        $region54: #{tpu_custom_call.1} parent=50 // pred_region
          %s322 = sand.u32 %s76, 1
          %s323 = scalar_lea.sflag [#allocation5], %s322
          %s324 = sand.u32 %s76, 1
          %s325 = smul.addr %s324, 8
          %s326 = scalar_lea.vmem [#allocation8], %s325
          %327 = dma.done %s323, 128
        $region55: #{tpu_custom_call.1} parent=50 // pred_fallthru
          _
      $region51: #{tpu_custom_call.1} parent=5 // pred_fallthru
        _
    $region6: #{tpu_custom_call.1} parent=1 // loop_footer
      %s19 = sadd.s32 1, %s15
    $region7: #{tpu_custom_call.1} parent=1 // loop_footer_branch
      %14 = sbr.rel target = $region3
    $region8: #{tpu_custom_call.1} parent=1 // loop_exit
      _
    %328 = vsyncpa [#allocation4], 1
    %s329 = scalar_lea.sflag [#allocation4], 1
    %330 = vsyncpa %s329, 1
    %331 = vsyncpa [#allocation7], 1
    %s332 = scalar_lea.sflag [#allocation7], 1
    %333 = vsyncpa %s332, 1
    %334 = vsyncpa [#allocation5], 1
    %s335 = scalar_lea.sflag [#allocation5], 1
    %336 = vsyncpa %s335, 1

</llo_original>
